<compile_context>
chip_gen: v5e
topology: v5e:2x2
jax: 0.10.0
libtpu: 0.0.40
codegen_flags: <defaults>
</compile_context>

<pallas_src>
import functools

import numpy as np
import jax
import jax.numpy as jnp
from jax import lax
from jax.experimental import pallas as pl
from jax.experimental.pallas import tpu as pltpu

# ----------------------------- problem sizes --------------------------------
N = 2          # batch
C_IN = 4       # in_channels
C_OUT = 8      # out_channels
T = 16         # frames (H)
V = 16         # joints (W)
K = 5          # temporal kernel_size
STRIDE = 1
DILATION = 1
BN_EPS = 1e-5


# ------------------------------- kernel -------------------------------------
def _tconv_kernel(x_ref, w_ref, b_ref, y_ref, xs_ref, *,
                  n_taps, tap_step, pad_lanes, l_in, l_out, b_blk):
    """Fused temporal conv + BatchNorm (folded) for one batch block.

       x_ref : (B_blk, C_in, T*V)        bf16, UNPADDED lane-flattened input
       w_ref : (C_out, K*C_in)           bf16, BN-scale-folded weights
       b_ref : (C_out, 1)                f32,  folded conv bias + BN shift
       y_ref : (B_blk, C_out, L_out)     f32,  lane-flattened output
       xs_ref: (K*C_in, B_blk*L_out)     bf16 scratch, stacked shifted windows
    """
    c_in = x_ref.shape[1]

    # Zero-init the stacked operand: provides the implicit temporal zero-pad.
    xs_ref[...] = jnp.zeros_like(xs_ref)

    # Stack the K lane-shifted windows of every sample once (all static slices).
    for i in range(b_blk):
        xi = x_ref[i]                                        # (C_in, T*V)
        for k in range(n_taps):
            # tap-k window in per-sample *padded* lane coords: [k*dV, k*dV+L_out)
            # valid (unpadded) data occupies padded lanes   : [padV, padV+T*V)
            lo = max(k * tap_step, pad_lanes)
            hi = min(k * tap_step + l_out, pad_lanes + l_in)
            if hi <= lo:            # tap window entirely inside the zero pad
                continue
            src = lo - pad_lanes
            dst = i * l_out + (lo - k * tap_step)
            xs_ref[k * c_in:(k + 1) * c_in, dst:dst + (hi - lo)] = \
                xi[:, src:src + (hi - lo)]

    # One MXU matmul for all taps and all samples in the block (f32 accumulate).
    acc = jnp.dot(w_ref[...], xs_ref[...], preferred_element_type=jnp.float32)
    acc = acc + b_ref[...]                                   # folded bias / BN shift

    for i in range(b_blk):
        y_ref[i] = acc[:, i * l_out:(i + 1) * l_out].astype(y_ref.dtype)


# ------------------------------- wrapper -------------------------------------
def temporal_conv_pallas(x, p, *, kernel_size=K, stride=STRIDE, dilation=DILATION):
    f32, bf16 = jnp.float32, jnp.bfloat16
    n, c_in, t, v = x.shape
    c_out = p["w"].shape[0]

    pad = (kernel_size + (kernel_size - 1) * (dilation - 1) - 1) // 2
    t_pad = t + 2 * pad
    t_conv = t_pad - dilation * (kernel_size - 1)   # stride-1 conv output length
    l_in, l_out = t * v, t_conv * v

    # TODO(synk): BatchNorm is applied in inference mode (running stats folded
    # into the weights); training-mode batch statistics are not computed in-kernel.
    s = p["gamma"] / jnp.sqrt(p["var"] + BN_EPS)                       # (C_out,)  f32
    w_fold = p["w"].astype(f32) * s[:, None, None]                      # (C_out, C_in, K)
    b_fold = (p["b"] - p["mean"]) * s + p["beta"]                       # (C_out,)
    # (C_out, C_in, K) -> (C_out, K, C_in) -> (C_out, K*C_in); column k*C_in+c
    # multiplies the stacked-operand row holding tap k, channel c.
    w2 = jnp.transpose(w_fold, (0, 2, 1)).reshape(c_out, kernel_size * c_in)
    w2 = w2.astype(bf16)
    b_col = b_fold.astype(f32)[:, None]                                 # (C_out, 1)

    # Unpadded, lane-flattened, bf16 input — padding happens inside the kernel.
    x_flat = x.reshape(n, c_in, l_in).astype(bf16)

    b_blk = n                      # whole batch in one grid step at these sizes
    n_blocks = n // b_blk

    kernel = functools.partial(
        _tconv_kernel, n_taps=kernel_size, tap_step=dilation * v,
        pad_lanes=pad * v, l_in=l_in, l_out=l_out, b_blk=b_blk)

    out = pl.pallas_call(
        kernel,
        out_shape=jax.ShapeDtypeStruct((n, c_out, l_out), f32),
        grid_spec=pltpu.PrefetchScalarGridSpec(
            num_scalar_prefetch=0,
            grid=(n_blocks,),
            in_specs=[
                pl.BlockSpec((b_blk, c_in, l_in), lambda i: (i, 0, 0)),          # x block
                pl.BlockSpec((c_out, kernel_size * c_in), lambda i: (0, 0)),      # folded W
                pl.BlockSpec((c_out, 1), lambda i: (0, 0)),                       # folded bias
            ],
            out_specs=pl.BlockSpec((b_blk, c_out, l_out), lambda i: (i, 0, 0)),
            scratch_shapes=[
                pltpu.VMEM((kernel_size * c_in, b_blk * l_out), bf16),            # stacked taps
            ]),
        compiler_params=pltpu.CompilerParams(
            dimension_semantics=("parallel",)),
    )(x_flat, w2, b_col)

    y = out.reshape(n, c_out, t_conv, v)
    if stride > 1:
        # TODO(synk): compute only strided output columns in-kernel for stride>1.
        y = y[:, :, ::stride, :]
    return y


# --------------------------- parameters / reference --------------------------
def make_params(key):
    ks = jax.random.split(key, 6)
    bound = 1.0 / np.sqrt(C_IN * K)      # PyTorch Conv2d default init bound
    return {
        "w": jax.random.uniform(ks[0], (C_OUT, C_IN, K), jnp.float32, -bound, bound),
        "b": jax.random.uniform(ks[1], (C_OUT,), jnp.float32, -bound, bound),
        "gamma": 1.0 + 0.1 * jax.random.normal(ks[2], (C_OUT,), jnp.float32),
        "beta": 0.1 * jax.random.normal(ks[3], (C_OUT,), jnp.float32),
        "mean": 0.1 * jax.random.normal(ks[4], (C_OUT,), jnp.float32),
        "var": 1.0 + 0.1 * jax.random.uniform(ks[5], (C_OUT,), jnp.float32),
    }


def temporal_conv_ref(x, p, *, kernel_size=K, stride=STRIDE, dilation=DILATION):
    pad = (kernel_size + (kernel_size - 1) * (dilation - 1) - 1) // 2
    y = lax.conv_general_dilated(
        x.astype(jnp.float32), p["w"][..., None].astype(jnp.float32),
        window_strides=(stride, 1),
        padding=((pad, pad), (0, 0)),
        rhs_dilation=(dilation, 1),
        dimension_numbers=("NCHW", "OIHW", "NCHW"))
    y = y + p["b"][None, :, None, None]
    s = p["gamma"] / jnp.sqrt(p["var"] + BN_EPS)
    return ((y - p["mean"][None, :, None, None]) * s[None, :, None, None]
            + p["beta"][None, :, None, None])


# ---------------------------------- main -------------------------------------
if __name__ == "__main__":
    key = jax.random.PRNGKey(0)
    kx, kp = jax.random.split(key)
    x = jax.random.normal(kx, (N, C_IN, T, V), jnp.float32)
    params = make_params(kp)

    out = jax.jit(temporal_conv_pallas)(x, params)
    out = jax.block_until_ready(out)

    ref = temporal_conv_ref(x, params)
    pad = (K + (K - 1) * (DILATION - 1) - 1) // 2
    t_out = (T + 2 * pad - DILATION * (K - 1) - 1) // STRIDE + 1
    assert out.shape == (N, C_OUT, t_out, V)
    np.testing.assert_allclose(np.asarray(out), np.asarray(ref), rtol=5e-2, atol=5e-2)
    print("KERNEL_OK")
</pallas_src>

<mosaic_0001>
module attributes {stable_mosaic.version = 11 : i64} {
  func.func @_tconv_kernel(%arg0: i32, %arg1: memref<2x4x256xbf16, #tpu.memory_space<vmem>>, %arg2: memref<8x20xbf16, #tpu.memory_space<vmem>>, %arg3: memref<8x1xf32, #tpu.memory_space<vmem>>, %arg4: memref<2x8x256xf32, #tpu.memory_space<vmem>>, %arg5: memref<20x512xbf16, #tpu.memory_space<vmem>>) attributes {dimension_semantics = [#tpu.dimension_semantics<parallel>], iteration_bounds = array<i64: 1>, scalar_prefetch = 0 : i64, scratch_operands = 1 : i64, tpu.core_type = #tpu.core_type<tc>, window_params = [{transform_indices = @transform_0, window_bounds = array<i64: 2, 4, 256>}, {pipeline_mode = #tpu.pipeline_mode<synchronous>, transform_indices = @transform_1, window_bounds = array<i64: 8, 20>}, {pipeline_mode = #tpu.pipeline_mode<synchronous>, transform_indices = @transform_2, window_bounds = array<i64: 8, 1>}, {transform_indices = @transform_3, window_bounds = array<i64: 2, 8, 256>}]} {
    %cst = arith.constant 0.000000e+00 : bf16
    %0 = vector.broadcast %cst : bf16 to vector<20x512xbf16>
    %c0 = arith.constant 0 : index
    %c0_0 = arith.constant 0 : index
    %1 = vector.load %arg5[%c0, %c0_0] : memref<20x512xbf16, #tpu.memory_space<vmem>>, vector<20x512xbf16>
    tpu.vector_store %arg5[%c0, %c0_0], %0 {strides = array<i32>} : memref<20x512xbf16, #tpu.memory_space<vmem>>, vector<20x512xbf16>,
    %c0_1 = arith.constant 0 : index
    %c0_2 = arith.constant 0 : index
    %c0_3 = arith.constant 0 : index
    %2 = vector.load %arg1[%c0_1, %c0_2, %c0_3] : memref<2x4x256xbf16, #tpu.memory_space<vmem>>, vector<1x4x256xbf16>
    %3 = vector.shape_cast %2 : vector<1x4x256xbf16> to vector<4x256xbf16>
    %4 = vector.extract_strided_slice %3 {offsets = [0, 0], sizes = [4, 224], strides = [1, 1]} : vector<4x256xbf16> to vector<4x224xbf16>
    %c0_4 = arith.constant 0 : index
    %c32 = arith.constant 32 : index
    %5 = vector.load %arg5[%c0_4, %c32] : memref<20x512xbf16, #tpu.memory_space<vmem>>, vector<4x224xbf16>
    tpu.vector_store %arg5[%c0_4, %c32], %4 {strides = array<i32>} : memref<20x512xbf16, #tpu.memory_space<vmem>>, vector<4x224xbf16>,
    %6 = vector.extract_strided_slice %3 {offsets = [0, 0], sizes = [4, 240], strides = [1, 1]} : vector<4x256xbf16> to vector<4x240xbf16>
    %c4 = arith.constant 4 : index
    %c16 = arith.constant 16 : index
    %7 = vector.load %arg5[%c4, %c16] : memref<20x512xbf16, #tpu.memory_space<vmem>>, vector<4x240xbf16>
    tpu.vector_store %arg5[%c4, %c16], %6 {strides = array<i32>} : memref<20x512xbf16, #tpu.memory_space<vmem>>, vector<4x240xbf16>,
    %c8 = arith.constant 8 : index
    %c0_5 = arith.constant 0 : index
    %8 = vector.load %arg5[%c8, %c0_5] : memref<20x512xbf16, #tpu.memory_space<vmem>>, vector<4x256xbf16>
    tpu.vector_store %arg5[%c8, %c0_5], %3 {strides = array<i32>} : memref<20x512xbf16, #tpu.memory_space<vmem>>, vector<4x256xbf16>,
    %9 = vector.extract_strided_slice %3 {offsets = [0, 16], sizes = [4, 240], strides = [1, 1]} : vector<4x256xbf16> to vector<4x240xbf16>
    %c12 = arith.constant 12 : index
    %c0_6 = arith.constant 0 : index
    %10 = vector.load %arg5[%c12, %c0_6] : memref<20x512xbf16, #tpu.memory_space<vmem>>, vector<4x240xbf16>
    tpu.vector_store %arg5[%c12, %c0_6], %9 {strides = array<i32>} : memref<20x512xbf16, #tpu.memory_space<vmem>>, vector<4x240xbf16>,
    %11 = vector.extract_strided_slice %3 {offsets = [0, 32], sizes = [4, 224], strides = [1, 1]} : vector<4x256xbf16> to vector<4x224xbf16>
    %c16_7 = arith.constant 16 : index
    %c0_8 = arith.constant 0 : index
    %12 = vector.load %arg5[%c16_7, %c0_8] : memref<20x512xbf16, #tpu.memory_space<vmem>>, vector<4x224xbf16>
    tpu.vector_store %arg5[%c16_7, %c0_8], %11 {strides = array<i32>} : memref<20x512xbf16, #tpu.memory_space<vmem>>, vector<4x224xbf16>,
    %c1 = arith.constant 1 : index
    %c0_9 = arith.constant 0 : index
    %c0_10 = arith.constant 0 : index
    %13 = vector.load %arg1[%c1, %c0_9, %c0_10] : memref<2x4x256xbf16, #tpu.memory_space<vmem>>, vector<1x4x256xbf16>
    %14 = vector.shape_cast %13 : vector<1x4x256xbf16> to vector<4x256xbf16>
    %15 = vector.extract_strided_slice %14 {offsets = [0, 0], sizes = [4, 224], strides = [1, 1]} : vector<4x256xbf16> to vector<4x224xbf16>
    %c0_11 = arith.constant 0 : index
    %c288 = arith.constant 288 : index
    %16 = vector.load %arg5[%c0_11, %c288] : memref<20x512xbf16, #tpu.memory_space<vmem>>, vector<4x224xbf16>
    tpu.vector_store %arg5[%c0_11, %c288], %15 {strides = array<i32>} : memref<20x512xbf16, #tpu.memory_space<vmem>>, vector<4x224xbf16>,
    %17 = vector.extract_strided_slice %14 {offsets = [0, 0], sizes = [4, 240], strides = [1, 1]} : vector<4x256xbf16> to vector<4x240xbf16>
    %c4_12 = arith.constant 4 : index
    %c272 = arith.constant 272 : index
    %18 = vector.load %arg5[%c4_12, %c272] : memref<20x512xbf16, #tpu.memory_space<vmem>>, vector<4x240xbf16>
    tpu.vector_store %arg5[%c4_12, %c272], %17 {strides = array<i32>} : memref<20x512xbf16, #tpu.memory_space<vmem>>, vector<4x240xbf16>,
    %c8_13 = arith.constant 8 : index
    %c256 = arith.constant 256 : index
    %19 = vector.load %arg5[%c8_13, %c256] : memref<20x512xbf16, #tpu.memory_space<vmem>>, vector<4x256xbf16>
    tpu.vector_store %arg5[%c8_13, %c256], %14 {strides = array<i32>} : memref<20x512xbf16, #tpu.memory_space<vmem>>, vector<4x256xbf16>,
    %20 = vector.extract_strided_slice %14 {offsets = [0, 16], sizes = [4, 240], strides = [1, 1]} : vector<4x256xbf16> to vector<4x240xbf16>
    %c12_14 = arith.constant 12 : index
    %c256_15 = arith.constant 256 : index
    %21 = vector.load %arg5[%c12_14, %c256_15] : memref<20x512xbf16, #tpu.memory_space<vmem>>, vector<4x240xbf16>
    tpu.vector_store %arg5[%c12_14, %c256_15], %20 {strides = array<i32>} : memref<20x512xbf16, #tpu.memory_space<vmem>>, vector<4x240xbf16>,
    %22 = vector.extract_strided_slice %14 {offsets = [0, 32], sizes = [4, 224], strides = [1, 1]} : vector<4x256xbf16> to vector<4x224xbf16>
    %c16_16 = arith.constant 16 : index
    %c256_17 = arith.constant 256 : index
    %23 = vector.load %arg5[%c16_16, %c256_17] : memref<20x512xbf16, #tpu.memory_space<vmem>>, vector<4x224xbf16>
    tpu.vector_store %arg5[%c16_16, %c256_17], %22 {strides = array<i32>} : memref<20x512xbf16, #tpu.memory_space<vmem>>, vector<4x224xbf16>,
    %c0_18 = arith.constant 0 : index
    %c0_19 = arith.constant 0 : index
    %24 = vector.load %arg2[%c0_18, %c0_19] : memref<8x20xbf16, #tpu.memory_space<vmem>>, vector<8x20xbf16>
    %c0_20 = arith.constant 0 : index
    %c0_21 = arith.constant 0 : index
    %25 = vector.load %arg5[%c0_20, %c0_21] : memref<20x512xbf16, #tpu.memory_space<vmem>>, vector<20x512xbf16>
    %cst_22 = arith.constant dense<0.000000e+00> : vector<8x512xf32>
    %26 = tpu.matmul %24, %25, %cst_22 {dimension_numbers = #tpu.dot_dimension_numbers<[1], [0], [0], [1], [0, 0, 1, 1], [], []>} : vector<8x20xbf16>, vector<20x512xbf16>, vector<8x512xf32> -> vector<8x512xf32>
    %c0_23 = arith.constant 0 : index
    %c0_24 = arith.constant 0 : index
    %27 = vector.load %arg3[%c0_23, %c0_24] : memref<8x1xf32, #tpu.memory_space<vmem>>, vector<8x1xf32>
    %28 = vector.broadcast %27 : vector<8x1xf32> to vector<8x512xf32>
    %29 = arith.addf %26, %28 : vector<8x512xf32>
    %30 = vector.extract_strided_slice %29 {offsets = [0, 0], sizes = [8, 256], strides = [1, 1]} : vector<8x512xf32> to vector<8x256xf32>
    %c0_25 = arith.constant 0 : index
    %c0_26 = arith.constant 0 : index
    %c0_27 = arith.constant 0 : index
    %31 = vector.load %arg4[%c0_25, %c0_26, %c0_27] : memref<2x8x256xf32, #tpu.memory_space<vmem>>, vector<1x8x256xf32>
    %32 = vector.shape_cast %31 : vector<1x8x256xf32> to vector<8x256xf32>
    %33 = vector.shape_cast %30 : vector<8x256xf32> to vector<1x8x256xf32>
    tpu.vector_store %arg4[%c0_25, %c0_26, %c0_27], %33 {strides = array<i32>} : memref<2x8x256xf32, #tpu.memory_space<vmem>>, vector<1x8x256xf32>,
    %34 = vector.extract_strided_slice %29 {offsets = [0, 256], sizes = [8, 256], strides = [1, 1]} : vector<8x512xf32> to vector<8x256xf32>
    %c1_28 = arith.constant 1 : index
    %c0_29 = arith.constant 0 : index
    %c0_30 = arith.constant 0 : index
    %35 = vector.load %arg4[%c1_28, %c0_29, %c0_30] : memref<2x8x256xf32, #tpu.memory_space<vmem>>, vector<1x8x256xf32>
    %36 = vector.shape_cast %35 : vector<1x8x256xf32> to vector<8x256xf32>
    %37 = vector.shape_cast %34 : vector<8x256xf32> to vector<1x8x256xf32>
    tpu.vector_store %arg4[%c1_28, %c0_29, %c0_30], %37 {strides = array<i32>} : memref<2x8x256xf32, #tpu.memory_space<vmem>>, vector<1x8x256xf32>,
    return
  }
  func.func @transform_0(%arg0: i32) -> (i32, i32, i32) {
    %c0_i32 = arith.constant 0 : i32
    %c0_i32_0 = arith.constant 0 : i32
    %c0_i32_1 = arith.constant 0 : i32
    return %arg0, %c0_i32, %c0_i32_0 : i32, i32, i32
  }
  func.func @transform_1(%arg0: i32) -> (i32, i32) {
    %c0_i32 = arith.constant 0 : i32
    %c0_i32_0 = arith.constant 0 : i32
    %c0_i32_1 = arith.constant 0 : i32
    return %c0_i32, %c0_i32_0 : i32, i32
  }
  func.func @transform_2(%arg0: i32) -> (i32, i32) {
    %c0_i32 = arith.constant 0 : i32
    %c0_i32_0 = arith.constant 0 : i32
    %c0_i32_1 = arith.constant 0 : i32
    return %c0_i32, %c0_i32_0 : i32, i32
  }
  func.func @transform_3(%arg0: i32) -> (i32, i32, i32) {
    %c0_i32 = arith.constant 0 : i32
    %c0_i32_0 = arith.constant 0 : i32
    %c0_i32_1 = arith.constant 0 : i32
    return %arg0, %c0_i32, %c0_i32_0 : i32, i32, i32
  }
}

</mosaic_0001>

<llo_original>
// kernel: temporal_conv_pallas.1
$region0: #{temporal_conv_pallas.1}
  #allocation0 [shape = 'u32[]', space=smem, size = 0x4, offset = 0x4, fixed_abs, tag = 'smem constant byte address 0x4 - core index']
  #allocation1 [shape = 'u32[72,128]{1,0:T(1,128)}', space=vmem, size = 0x9000, scoped, tag = 'internal scratch']
  #allocation2 [shape = 'bf16[20,512]{1,0:T(8,128)(2,1)}', space=vmem, size = 0x6000, scoped, tag = 'scratch operand']
  %s0 = inlined_call_operand.vmem [shape: bf16[2,4,256], index: 0, kind: input, shape index: {}]
  %s1 = inlined_call_operand.vmem [shape: bf16[8,20], index: 1, kind: input, shape index: {}]
  %s2 = inlined_call_operand.vmem [shape: f32[8,1], index: 2, kind: input, shape index: {}]
  %s3 = inlined_call_operand.vmem [shape: f32[2,8,256], index: 3, kind: output, shape index: {}]
  %s4 = sld [smem:[#allocation0]]
  $region22: #{temporal_conv_pallas.1} parent=0
    _
  %s6 = ssub.s32 1, %s4
  %s7 = scalar_select 0, %s6, %s4
  // Predicated region
  $region2: #{temporal_conv_pallas.1} parent=0 // pred_check
    _
  $region3: #{temporal_conv_pallas.1} parent=0 // pred_check_branch
    %9 = sbr.rel (0) target = $region5
  $region4: #{temporal_conv_pallas.1} parent=0 // pred_region
    _
  $region5: #{temporal_conv_pallas.1} parent=0 // pred_fallthru
    _
  // Predicated region
  $region6: #{temporal_conv_pallas.1} parent=0 // pred_check
    _
  $region7: #{temporal_conv_pallas.1} parent=0 // pred_check_branch
    %11 = sbr.rel (0) target = $region9
  $region8: #{temporal_conv_pallas.1} parent=0 // pred_region
    _
  $region9: #{temporal_conv_pallas.1} parent=0 // pred_fallthru
    _
  // Predicated region
  $region10: #{temporal_conv_pallas.1} parent=0 // pred_check
    _
  $region11: #{temporal_conv_pallas.1} parent=0 // pred_check_branch
    %13 = sbr.rel (0) target = $region13
  $region12: #{temporal_conv_pallas.1} parent=0 // pred_region
    _
  $region13: #{temporal_conv_pallas.1} parent=0 // pred_fallthru
    _
  %15 = vst [vmem:[#allocation2] sm:$0xff] 0
  %16 = vst [vmem:[#allocation2 + $0x8] sm:$0xff] 0
  %17 = vst [vmem:[#allocation2 + $0x10] sm:$0xff] 0
  %18 = vst [vmem:[#allocation2 + $0x18] sm:$0xff] 0
  %19 = vst [vmem:[#allocation2 + $0x20] sm:$0x33] 0
  %20 = vst [vmem:[#allocation2 + $0x28] sm:$0x33] 0
  %v21 = vld [vmem:[%s0] sm:$0xf]
  %23 = vst [vmem:[#allocation1] ss:$2 sm:$0xff] %v21
  %v24 = vld.sshfl [vmem:[#allocation1] sm:$0xff pattern:$0x75643120]
  %26 = vrot.lane.b32.xlu0 %v24, 32
  %v27 = vpop.permute.xlu0 %26
  %v28 = vrot.slane %v27, 4
  %vm29 = vcmask 261120
  %v30 = vsel %vm29, %v28, %v27
  %vm32 = vcmask 1041664
  %vm33 = vcmask 1045508
  %vm34 = vmor %vm33, %vm32
  %35 = vst.msk [vmem:[#allocation2] sm:$0x33] %vm34, %v30
  %s36 = scalar_lea.vmem [#allocation1], 1
  %37 = vst [vmem:[%s36] ss:$2 sm:$0xff] %v21
  %v38 = vld.sshfl [vmem:[#allocation1] sm:$0xff pattern:$0x75643120]
  %40 = vrot.lane.b32.xlu0 %v38, 16
  %v41 = vpop.permute.xlu0 %40
  %v42 = vrot.slane %v41, 4
  %vm43 = vcmask 130048
  %v44 = vsel %vm43, %v42, %v41
  %vm46 = vcmask 1043586
  %vm47 = vcmask 1047558
  %vm48 = vmor %vm47, %vm46
  %49 = vst.msk [vmem:[#allocation2] sm:$0xcc] %vm48, %v44
  %50 = vst [vmem:[#allocation1] ss:$2 sm:$0xff] %v21
  %v51 = vld.sshfl [vmem:[#allocation1] sm:$0xff pattern:$0x75643120]
  %53 = vst [vmem:[#allocation2 + $0x10] sm:$0x33] %v51
  %s54 = scalar_lea.vmem [#allocation1], 1
  %55 = vst [vmem:[%s54] ss:$2 sm:$0xff] %v21
  %v56 = vld.sshfl [vmem:[#allocation1] sm:$0xff pattern:$0x75643120]
  %58 = vrot.lane.b32.xlu0 %v56, 112
  %v59 = vpop.permute.xlu0 %58
  %v60 = vrot.slane %v59, 4
  %vm61 = vcmask 916480
  %v62 = vsel %vm61, %v59, %v60
  %vm64 = vcmask 1043458
  %vm65 = vcmask 916486
  %vm66 = vmor %vm65, %vm64
  %67 = vst.msk [vmem:[#allocation2 + $0x10] sm:$0xcc] %vm66, %v62
  %68 = vst [vmem:[#allocation1] ss:$2 sm:$0xff] %v21
  %v69 = vld.sshfl [vmem:[#allocation1] sm:$0xff pattern:$0x75643120]
  %71 = vrot.lane.b32.xlu0 %v69, 96
  %v72 = vpop.permute.xlu0 %71
  %v73 = vrot.slane %v72, 4
  %vm74 = vcmask 785408
  %v75 = vsel %vm74, %v72, %v73
  %vm77 = vcmask 1041408
  %vm78 = vcmask 783364
  %vm79 = vmor %vm78, %vm77
  %80 = vst.msk [vmem:[#allocation2 + $0x20] sm:$0x33] %vm79, %v75
  %s81 = scalar_lea.vmem %s0, 4
  %v82 = vld [vmem:[%s81] sm:$0xf]
  %84 = vst [vmem:[#allocation1] ss:$2 sm:$0xff] %v82
  %v85 = vld.sshfl [vmem:[#allocation1] sm:$0xff pattern:$0x75643120]
  %87 = vrot.lane.b32.xlu0 %v85, 32
  %v88 = vpop.permute.xlu0 %87
  %v89 = vrot.slane %v88, 4
  %v90 = vsel %vm29, %v89, %v88
  %92 = vst.msk [vmem:[#allocation2 + $0x8] sm:$0x33] %vm34, %v90
  %s93 = scalar_lea.vmem [#allocation1], 1
  %94 = vst [vmem:[%s93] ss:$2 sm:$0xff] %v82
  %v95 = vld.sshfl [vmem:[#allocation1] sm:$0xff pattern:$0x75643120]
  %97 = vrot.lane.b32.xlu0 %v95, 16
  %v98 = vpop.permute.xlu0 %97
  %v99 = vrot.slane %v98, 4
  %v100 = vsel %vm43, %v99, %v98
  %102 = vst.msk [vmem:[#allocation2 + $0x8] sm:$0xcc] %vm48, %v100
  %103 = vst [vmem:[#allocation1] ss:$2 sm:$0xff] %v82
  %v104 = vld.sshfl [vmem:[#allocation1] sm:$0xff pattern:$0x75643120]
  %106 = vst [vmem:[#allocation2 + $0x18] sm:$0x33] %v104
  %s107 = scalar_lea.vmem [#allocation1], 1
  %108 = vst [vmem:[%s107] ss:$2 sm:$0xff] %v82
  %v109 = vld.sshfl [vmem:[#allocation1] sm:$0xff pattern:$0x75643120]
  %111 = vrot.lane.b32.xlu0 %v109, 112
  %v112 = vpop.permute.xlu0 %111
  %v113 = vrot.slane %v112, 4
  %v114 = vsel %vm61, %v112, %v113
  %116 = vst.msk [vmem:[#allocation2 + $0x18] sm:$0xcc] %vm66, %v114
  %117 = vst [vmem:[#allocation1] ss:$2 sm:$0xff] %v82
  %v118 = vld.sshfl [vmem:[#allocation1] sm:$0xff pattern:$0x75643120]
  %120 = vrot.lane.b32.xlu0 %v118, 96
  %v121 = vpop.permute.xlu0 %120
  %v122 = vrot.slane %v121, 4
  %v123 = vsel %vm74, %v121, %v122
  %125 = vst.msk [vmem:[#allocation2 + $0x28] sm:$0x33] %vm79, %v123
  %v126 = vld [vmem:[%s1] sm:$0xf]
  %v127 = vld [vmem:[#allocation2] sm:$0xff]
  %v128 = vld [vmem:[#allocation2 + $0x8] sm:$0xff]
  %v129 = vld [vmem:[#allocation2 + $0x10] sm:$0xff]
  %v130 = vld [vmem:[#allocation2 + $0x18] sm:$0xff]
  %v131 = vld [vmem:[#allocation2 + $0x20] sm:$0x33]
  %v132 = vld [vmem:[#allocation2 + $0x28] sm:$0x33]
  %v133 = vld [vmem:[%s2] sm:$0xff]
  %135 = vset.pattern.permute.xlu0 0
  %136 = vperm.xlu0 %135, %v133
  %v137 = vpop.permute.xlu0 %136
  %v145 = vunpack.c.l.b16 %v127
  %v146 = vunpack.c.h.b16 %v127
  %v147 = vunpack.c.l.b16 %v128
  %v148 = vunpack.c.h.b16 %v128
  %v149 = vunpack.c.l.b16 %v129
  %v150 = vunpack.c.h.b16 %v129
  %v151 = vunpack.c.l.b16 %v130
  %v152 = vunpack.c.h.b16 %v130
  %v153 = vunpack.c.l.b16 %v131
  %v154 = vunpack.c.h.b16 %v131
  %v155 = vunpack.c.l.b16 %v132
  %v156 = vunpack.c.h.b16 %v132
  %v157 = vpack.c.b16 %v149, %v145
  %v158 = vpack.c.b16 %v150, %v146
  %v159 = vpack.c.b16 %v151, %v147
  %v160 = vpack.c.b16 %v152, %v148
  %v161 = vpack.c.b16 %v153, %v153
  %v162 = vpack.c.b16 %v154, %v154
  %v163 = vpack.c.b16 %v155, %v155
  %v164 = vpack.c.b16 %v156, %v156
  %vm169 = vcmask 162816
  %v171 = vsel %vm169, %v126, 0
  %v174 = vsel %vm77, %v161, 0
  %v177 = vsel %vm77, %v162, 0
  %v180 = vsel %vm77, %v163, 0
  %v183 = vsel %vm77, %v164, 0
  %185 = vmatpush.bf16.msra.mxu0 0
  %186 = vmatpush.bf16.msra.mxu0 0
  %187 = vmatpush.bf16.msra.mxu0 0
  %188 = vmatpush.bf16.msra.mxu0 0
  %189 = vmatpush.bf16.msra.mxu0 0
  %190 = vmatpush.bf16.msra.mxu0 0
  %191 = vmatpush.bf16.msra.mxu0 %v174
  %192 = vmatpush.bf16.msra.mxu0 %v157
  %193 = vmatmul.bf16.gmra.mxu0 %v171
  %v194 = vpop.f32.mrf.mxu0
  %v195 = vadd.f32 %v137, %v194
  %v196 = vpop.f32.mrf.mxu0
  %197 = vdwg.mxu0
  %198 = vmatpush.bf16.msra.mxu0 0
  %199 = vmatpush.bf16.msra.mxu0 0
  %200 = vmatpush.bf16.msra.mxu0 0
  %201 = vmatpush.bf16.msra.mxu0 0
  %202 = vmatpush.bf16.msra.mxu0 0
  %203 = vmatpush.bf16.msra.mxu0 0
  %204 = vmatpush.bf16.msra.mxu0 %v177
  %205 = vmatpush.bf16.msra.mxu0 %v158
  %206 = vmatmul.bf16.gmra.mxu0 %v171
  %v207 = vpop.f32.mrf.mxu0
  %v208 = vadd.f32 %v137, %v207
  %v209 = vpop.f32.mrf.mxu0
  %210 = vdwg.mxu0
  %211 = vmatpush.bf16.msra.mxu0 0
  %212 = vmatpush.bf16.msra.mxu0 0
  %213 = vmatpush.bf16.msra.mxu0 0
  %214 = vmatpush.bf16.msra.mxu0 0
  %215 = vmatpush.bf16.msra.mxu0 0
  %216 = vmatpush.bf16.msra.mxu0 0
  %217 = vmatpush.bf16.msra.mxu0 %v180
  %218 = vmatpush.bf16.msra.mxu0 %v159
  %219 = vmatmul.bf16.gmra.mxu0 %v171
  %v220 = vpop.f32.mrf.mxu0
  %v221 = vadd.f32 %v137, %v220
  %v222 = vpop.f32.mrf.mxu0
  %223 = vdwg.mxu0
  %224 = vmatpush.bf16.msra.mxu0 0
  %225 = vmatpush.bf16.msra.mxu0 0
  %226 = vmatpush.bf16.msra.mxu0 0
  %227 = vmatpush.bf16.msra.mxu0 0
  %228 = vmatpush.bf16.msra.mxu0 0
  %229 = vmatpush.bf16.msra.mxu0 0
  %230 = vmatpush.bf16.msra.mxu0 %v183
  %231 = vmatpush.bf16.msra.mxu0 %v160
  %232 = vmatmul.bf16.gmra.mxu0 %v171
  %v233 = vpop.f32.mrf.mxu0
  %v234 = vadd.f32 %v137, %v233
  %v235 = vpop.f32.mrf.mxu0
  %236 = vdwg.mxu0
  %237 = vst [vmem:[%s3] sm:$0xff] %v195
  %238 = vst [vmem:[%s3 + $0x8] sm:$0xff] %v208
  %s239 = scalar_lea.vmem %s3, 16
  %240 = vst [vmem:[%s239] sm:$0xff] %v221
  %241 = vst [vmem:[%s239 + $0x8] sm:$0xff] %v234
  // Predicated region
  $region14: #{temporal_conv_pallas.1} parent=0 // pred_check
    _
  $region15: #{temporal_conv_pallas.1} parent=0 // pred_check_branch
    %243 = sbr.rel (0) target = $region17
  $region16: #{temporal_conv_pallas.1} parent=0 // pred_region
    _
  $region17: #{temporal_conv_pallas.1} parent=0 // pred_fallthru
    _
  // Predicated region
  $region18: #{temporal_conv_pallas.1} parent=0 // pred_check
    _
  $region19: #{temporal_conv_pallas.1} parent=0 // pred_check_branch
    %245 = sbr.rel (0) target = $region21
  $region20: #{temporal_conv_pallas.1} parent=0 // pred_region
    _
  $region21: #{temporal_conv_pallas.1} parent=0 // pred_fallthru
    _

</llo_original>
